<compile_context>
chip_gen: v5e
topology: v5e:2x2
jax: 0.10.0
libtpu: 0.0.40
codegen_flags: <defaults>
</compile_context>

<pallas_src>
import functools

import jax
import jax.numpy as jnp
from jax.experimental import pallas as pl
from jax.experimental.pallas import tpu as pltpu


_TARGET_BLOCK_BYTES = 4 * 1024 * 1024   # per array per block
_VMEM_LIMIT_BYTES = 48 * 1024 * 1024    # 5 arrays x 2 buffers x 4 MiB = 40 MiB + headroom


def _neuron_circuit_kernel(q_ref, acc_ref, thresh_ref,
                           q_out_ref, acc_out_ref, cur_out_ref):
    """Elementwise spiking-neuron update on one (block_rows, lane) tile."""
    pos_max = thresh_ref[0]
    neg_min = thresh_ref[1]
    q = q_ref[...].astype(jnp.float32)
    acc_q = acc_ref[...].astype(jnp.float32)
    one = jnp.float32(1.0)
    zero = jnp.float32(0.0)
    # spike_pos needs q - 1 >= 0 and spike_neg needs q < 0: mutually
    # exclusive, so a fused select chain reproduces
    #   cur = spike_pos.float() - spike_neg.float()   (values in {-1, 0, +1})
    cur = jnp.where(
        q - one >= zero,
        jnp.where(acc_q < pos_max, one, zero),
        jnp.where(jnp.logical_and(q < zero, acc_q > neg_min), -one, zero),
    )
    q_out_ref[...] = (q - cur).astype(q_out_ref.dtype)
    acc_out_ref[...] = (acc_q + cur).astype(acc_out_ref.dtype)
    cur_out_ref[...] = cur.astype(cur_out_ref.dtype)


def _round_up(x, m):
    return -(-x // m) * m


def neuron_circuit(q, acc_q, pos_max, neg_min, *, _alias_io=False):
    """Pallas implementation of NeuronCircuit.forward.

    q, acc_q: arrays of identical shape (e.g. NCHW activations).
    Returns (q_new, acc_q_new, cur_output), same shape as q.
    """
    assert q.shape == acc_q.shape, "q and acc_q must have the same shape"
    orig_shape = q.shape
    total = int(q.size)

    in_dtype = jnp.result_type(q.dtype, acc_q.dtype)
    # torch: spike.float() promotes everything to >= float32.
    out_dtype = jnp.promote_types(in_dtype, jnp.float32)
    min_item = min(jnp.dtype(in_dtype).itemsize, jnp.dtype(out_dtype).itemsize)
    sub = 8 * max(1, 4 // min_item)          # sublane multiple: 8 f32 / 16 bf16 / 32 int8

    # Lane-dense slab: widest lane dividing the element count (no padding);
    # otherwise pad the flat array to a lane multiple (< 128 extra elements).
    lane = 0
    for cand in (1024, 512, 256, 128):
        if total % cand == 0:
            lane = cand
            break
    if lane:
        padded_total = total
    else:
        lane = 128
        padded_total = _round_up(total, lane)
    rows = padded_total // lane
    need_pad = padded_total != total

    # ~4 MiB per array per block; the grid handles a ragged last block
    # (masked), so block_rows never degrades to tiny DMAs for odd row counts.
    bytes_per_row = lane * max(jnp.dtype(in_dtype).itemsize,
                               jnp.dtype(out_dtype).itemsize)
    max_block_rows = max(sub, (_TARGET_BLOCK_BYTES // bytes_per_row) // sub * sub)
    if rows <= sub:
        block_rows = rows                     # block == full array dims (always legal)
    elif rows <= max_block_rows:
        # Expose at least two grid steps so both TensorCores stream on v7x.
        block_rows = min(max_block_rows, _round_up(-(-rows // 2), sub))
    else:
        block_rows = max_block_rows
    num_blocks = pl.cdiv(rows, block_rows)

    def to_slab(x):
        x = x.reshape(-1)
        if x.dtype != in_dtype:
            x = x.astype(in_dtype)            # no-op when dtypes already match
        if need_pad:
            x = jnp.pad(x, (0, padded_total - total))
        return x.reshape(rows, lane)

    q2 = to_slab(q)
    acc2 = to_slab(acc_q)
    thresh = jnp.stack([jnp.asarray(pos_max, jnp.float32).reshape(()),
                        jnp.asarray(neg_min, jnp.float32).reshape(())])

    spec = pl.BlockSpec((block_rows, lane), lambda i: (i, 0))
    smem_spec = pl.BlockSpec(memory_space=pltpu.MemorySpace.SMEM)
    out_sds = jax.ShapeDtypeStruct((rows, lane), out_dtype)

    # In-place only when the caller donated the inputs (otherwise XLA would
    # insert defensive copies and increase HBM traffic).
    aliases = {0: 0, 1: 1} if (_alias_io and in_dtype == out_dtype) else {}

    q_o, acc_o, cur_o = pl.pallas_call(
        _neuron_circuit_kernel,
        out_shape=(out_sds, out_sds, out_sds),
        grid_spec=pltpu.PrefetchScalarGridSpec(
            num_scalar_prefetch=0,
            grid=(num_blocks,),
            in_specs=[spec, spec, smem_spec],
            out_specs=[spec, spec, spec],
        ),
        compiler_params=pltpu.CompilerParams(
            dimension_semantics=("parallel",),
            vmem_limit_bytes=_VMEM_LIMIT_BYTES),
        input_output_aliases=aliases,
    )(q2, acc2, thresh)

    def from_slab(x):
        if need_pad:
            x = x.reshape(-1)[:total]
        return x.reshape(orig_shape)

    return from_slab(q_o), from_slab(acc_o), from_slab(cur_o)


# Opt-in donating entry point: q / acc_q buffers are reused in place for
# q_out / acc_out (input_output_aliases), halving peak HBM footprint.
neuron_circuit_inplace = jax.jit(
    functools.partial(neuron_circuit, _alias_io=True),
    donate_argnums=(0, 1))


def neuron_circuit_ref(q, acc_q, pos_max, neg_min):
    spike_pos = jnp.logical_and(q - 1.0 >= 0.0, acc_q < pos_max)
    spike_neg = jnp.logical_and(q < 0.0, acc_q > neg_min)
    cur_output = spike_pos.astype(jnp.float32) - spike_neg.astype(jnp.float32)
    return q - cur_output, acc_q + cur_output, cur_output


def _assert_match(got, ref):
    q_new, acc_new, cur_out = got
    q_r, acc_r, cur_r = ref
    assert jnp.allclose(q_new, q_r), "q mismatch"
    assert jnp.allclose(acc_new, acc_r), "acc_q mismatch"
    assert jnp.allclose(cur_out, cur_r), "cur_output mismatch"


if __name__ == "__main__":
    key = jax.random.PRNGKey(0)
    k1, k2, k3, k4 = jax.random.split(key, 4)

    pos_max, neg_min = 3.0, -3.0

    # Small NCHW activations, consistent with a spiking-quant conv layer.
    B, C, H, W = 2, 4, 16, 16
    q = jax.random.normal(k1, (B, C, H, W), dtype=jnp.float32) * 2.0
    acc_q = jnp.round(
        jax.random.uniform(k2, (B, C, H, W), minval=-4.0, maxval=4.0)
    ).astype(jnp.float32)
    ref = neuron_circuit_ref(q, acc_q, pos_max, neg_min)   # before donation
    got = neuron_circuit_inplace(q, acc_q, pos_max, neg_min)
    jax.block_until_ready(got)
    _assert_match(got, ref)

    # Odd-sized shape: exercises the minimal lane-pad + ragged-grid path.
    q2 = jax.random.normal(k3, (3, 5, 7, 11), dtype=jnp.float32) * 2.0
    acc2 = jnp.round(
        jax.random.uniform(k4, (3, 5, 7, 11), minval=-4.0, maxval=4.0)
    ).astype(jnp.float32)
    got2 = neuron_circuit(q2, acc2, pos_max, neg_min)       # non-donating path
    jax.block_until_ready(got2)
    _assert_match(got2, neuron_circuit_ref(q2, acc2, pos_max, neg_min))

    print("KERNEL_OK")
</pallas_src>

<mosaic_0001>
module attributes {stable_mosaic.version = 11 : i64} {
  func.func @_neuron_circuit_kernel(%arg0: i32, %arg1: memref<2x1024xf32, #tpu.memory_space<vmem>>, %arg2: memref<2x1024xf32, #tpu.memory_space<vmem>>, %arg3: memref<2xf32, #tpu.memory_space<smem>>, %arg4: memref<2x1024xf32, #tpu.memory_space<vmem>>, %arg5: memref<2x1024xf32, #tpu.memory_space<vmem>>, %arg6: memref<2x1024xf32, #tpu.memory_space<vmem>>) attributes {dimension_semantics = [#tpu.dimension_semantics<parallel>], iteration_bounds = array<i64: 1>, scalar_prefetch = 0 : i64, scratch_operands = 0 : i64, tpu.core_type = #tpu.core_type<tc>, window_params = [{transform_indices = @transform_0, window_bounds = array<i64: 2, 1024>}, {transform_indices = @transform_1, window_bounds = array<i64: 2, 1024>}, {transform_indices = @transform_2, window_bounds = array<i64: 2>}, {transform_indices = @transform_3, window_bounds = array<i64: 2, 1024>}, {transform_indices = @transform_4, window_bounds = array<i64: 2, 1024>}, {transform_indices = @transform_5, window_bounds = array<i64: 2, 1024>}]} {
    %c0 = arith.constant 0 : index
    %0 = memref.load %arg3[%c0] : memref<2xf32, #tpu.memory_space<smem>>
    %c1 = arith.constant 1 : index
    %1 = memref.load %arg3[%c1] : memref<2xf32, #tpu.memory_space<smem>>
    %c0_0 = arith.constant 0 : index
    %c0_1 = arith.constant 0 : index
    %2 = vector.load %arg1[%c0_0, %c0_1] : memref<2x1024xf32, #tpu.memory_space<vmem>>, vector<2x1024xf32>
    %c0_2 = arith.constant 0 : index
    %c0_3 = arith.constant 0 : index
    %3 = vector.load %arg2[%c0_2, %c0_3] : memref<2x1024xf32, #tpu.memory_space<vmem>>, vector<2x1024xf32>
    %cst = arith.constant 1.000000e+00 : f32
    %4 = vector.broadcast %cst : f32 to vector<2x1024xf32>
    %5 = arith.subf %2, %4 : vector<2x1024xf32>
    %cst_4 = arith.constant 0.000000e+00 : f32
    %6 = vector.broadcast %cst_4 : f32 to vector<2x1024xf32>
    %7 = arith.cmpf oge, %5, %6 : vector<2x1024xf32>
    %8 = vector.broadcast %0 : f32 to vector<2x1024xf32>
    %9 = arith.cmpf olt, %3, %8 : vector<2x1024xf32>
    %cst_5 = arith.constant 1.000000e+00 : f32
    %cst_6 = arith.constant 0.000000e+00 : f32
    %10 = vector.broadcast %cst_5 : f32 to vector<2x1024xf32>
    %11 = vector.broadcast %cst_6 : f32 to vector<2x1024xf32>
    %12 = arith.select %9, %10, %11 : vector<2x1024xi1>, vector<2x1024xf32>
    %cst_7 = arith.constant 0.000000e+00 : f32
    %13 = vector.broadcast %cst_7 : f32 to vector<2x1024xf32>
    %14 = arith.cmpf olt, %2, %13 : vector<2x1024xf32>
    %15 = vector.broadcast %1 : f32 to vector<2x1024xf32>
    %16 = arith.cmpf ogt, %3, %15 : vector<2x1024xf32>
    %17 = arith.andi %14, %16 : vector<2x1024xi1>
    %cst_8 = arith.constant 0.000000e+00 : f32
    %cst_9 = arith.constant 1.000000e+00 : f32
    %18 = arith.subf %cst_8, %cst_9 : f32
    %cst_10 = arith.constant 0.000000e+00 : f32
    %19 = vector.broadcast %18 : f32 to vector<2x1024xf32>
    %20 = vector.broadcast %cst_10 : f32 to vector<2x1024xf32>
    %21 = arith.select %17, %19, %20 : vector<2x1024xi1>, vector<2x1024xf32>
    %22 = arith.select %7, %12, %21 : vector<2x1024xi1>, vector<2x1024xf32>
    %23 = arith.subf %2, %22 : vector<2x1024xf32>
    %c0_11 = arith.constant 0 : index
    %c0_12 = arith.constant 0 : index
    %24 = vector.load %arg4[%c0_11, %c0_12] : memref<2x1024xf32, #tpu.memory_space<vmem>>, vector<2x1024xf32>
    tpu.vector_store %arg4[%c0_11, %c0_12], %23 {strides = array<i32>} : memref<2x1024xf32, #tpu.memory_space<vmem>>, vector<2x1024xf32>,
    %25 = arith.addf %3, %22 : vector<2x1024xf32>
    %c0_13 = arith.constant 0 : index
    %c0_14 = arith.constant 0 : index
    %26 = vector.load %arg5[%c0_13, %c0_14] : memref<2x1024xf32, #tpu.memory_space<vmem>>, vector<2x1024xf32>
    tpu.vector_store %arg5[%c0_13, %c0_14], %25 {strides = array<i32>} : memref<2x1024xf32, #tpu.memory_space<vmem>>, vector<2x1024xf32>,
    %c0_15 = arith.constant 0 : index
    %c0_16 = arith.constant 0 : index
    %27 = vector.load %arg6[%c0_15, %c0_16] : memref<2x1024xf32, #tpu.memory_space<vmem>>, vector<2x1024xf32>
    tpu.vector_store %arg6[%c0_15, %c0_16], %22 {strides = array<i32>} : memref<2x1024xf32, #tpu.memory_space<vmem>>, vector<2x1024xf32>,
    return
  }
  func.func @transform_0(%arg0: i32) -> (i32, i32) {
    %c0_i32 = arith.constant 0 : i32
    %c0_i32_0 = arith.constant 0 : i32
    return %arg0, %c0_i32 : i32, i32
  }
  func.func @transform_1(%arg0: i32) -> (i32, i32) {
    %c0_i32 = arith.constant 0 : i32
    %c0_i32_0 = arith.constant 0 : i32
    return %arg0, %c0_i32 : i32, i32
  }
  func.func @transform_2(%arg0: i32) -> i32 {
    %c0_i32 = arith.constant 0 : i32
    %c0_i32_0 = arith.constant 0 : i32
    return %c0_i32 : i32
  }
  func.func @transform_3(%arg0: i32) -> (i32, i32) {
    %c0_i32 = arith.constant 0 : i32
    %c0_i32_0 = arith.constant 0 : i32
    return %arg0, %c0_i32 : i32, i32
  }
  func.func @transform_4(%arg0: i32) -> (i32, i32) {
    %c0_i32 = arith.constant 0 : i32
    %c0_i32_0 = arith.constant 0 : i32
    return %arg0, %c0_i32 : i32, i32
  }
  func.func @transform_5(%arg0: i32) -> (i32, i32) {
    %c0_i32 = arith.constant 0 : i32
    %c0_i32_0 = arith.constant 0 : i32
    return %arg0, %c0_i32 : i32, i32
  }
}

</mosaic_0001>

<llo_original>
// kernel: neuron_circuit.1
$region0: #{neuron_circuit.1}
  #allocation0 [shape = 'u32[]', space=smem, size = 0x4, offset = 0x4, fixed_abs, tag = 'smem constant byte address 0x4 - core index']
  #allocation1 [shape = 'u32[72,128]{1,0:T(1,128)}', space=vmem, size = 0x9000, scoped, tag = 'internal scratch']
  %s0 = inlined_call_operand.vmem [shape: f32[2,1024], index: 0, kind: input, shape index: {}, may-alias: {0,3}]
  %s1 = inlined_call_operand.vmem [shape: f32[2,1024], index: 1, kind: input, shape index: {}, may-alias: {1,4}]
  %s2 = inlined_call_operand.vmem [shape: f32[2], index: 2, kind: input, shape index: {}]
  %s3 = inlined_call_operand.vmem [shape: f32[2,1024], index: 3, kind: output, shape index: {0}, may-alias: {0,3}]
  %s4 = inlined_call_operand.vmem [shape: f32[2,1024], index: 4, kind: output, shape index: {1}, may-alias: {1,4}]
  %s5 = inlined_call_operand.vmem [shape: f32[2,1024], index: 5, kind: output, shape index: {2}]
  %6 = xla_tuple %s3, %s4, %s5
  %s7 = sld [smem:[#allocation0]]
  $region42: #{neuron_circuit.1} parent=0
    _
  %s9 = ssub.s32 1, %s7
  %s10 = scalar_select 0, %s9, %s7
  $region1: #{neuron_circuit.1} parent=0
    #allocation2 [shape = 'u8[512]{0}', space=smem, size = 0x200, scoped, tag = 'input window, operand 2, single buffered']
    #allocation3 [shape = 's32[1]{0}', space=sflag, size = 0x4, scoped, tag = 'scoped memory for neuron_circuit.1']
    %11 = vsyncpa [#allocation3], 0
    // Predicated region
    $region2: #{neuron_circuit.1} parent=1 // pred_check
      _
    $region3: #{neuron_circuit.1} parent=1 // pred_check_branch
      %13 = sbr.rel (0) target = $region5
    $region4: #{neuron_circuit.1} parent=1 // pred_region
      _
    $region5: #{neuron_circuit.1} parent=1 // pred_fallthru
      _
    // Predicated region
    $region6: #{neuron_circuit.1} parent=1 // pred_check
      _
    $region7: #{neuron_circuit.1} parent=1 // pred_check_branch
      %15 = sbr.rel (0) target = $region9
    $region8: #{neuron_circuit.1} parent=1 // pred_region
      _
    $region9: #{neuron_circuit.1} parent=1 // pred_fallthru
      _
    // Predicated region
    $region10: #{neuron_circuit.1} parent=1 // pred_check
      _
    $region11: #{neuron_circuit.1} parent=1 // pred_check_branch
      %17 = sbr.rel (0) target = $region13
    $region12: #{neuron_circuit.1} parent=1 // pred_region
      %19 = vsyncadd [#allocation3], 0
      %s21 = sshll.u32 %s2, 4
      %s22 = int_to_ptr.vmem [resolvable:$true] %s21
      %24 = dma.vmem_to_smem %s22, 16, [#allocation2], [#allocation3]
    $region13: #{neuron_circuit.1} parent=1 // pred_fallthru
      _
    // Predicated region
    $region14: #{neuron_circuit.1} parent=1 // pred_check
      _
    $region15: #{neuron_circuit.1} parent=1 // pred_check_branch
      %26 = sbr.rel (0) target = $region17
    $region16: #{neuron_circuit.1} parent=1 // pred_region
      %28 = dma.done [#allocation3], 16
    $region17: #{neuron_circuit.1} parent=1 // pred_fallthru
      _
    %29 = sfence
    %s30 = sld [smem:[#allocation2]]
    %s31 = sld [smem:[#allocation2 + $0x1]]
    %v32 = vld [vmem:[%s0] sm:$0xff]
    %v33 = vld [vmem:[%s0 + $0x8] sm:$0xff]
    %v34 = vld [vmem:[%s1] sm:$0xff]
    %v35 = vld [vmem:[%s1 + $0x8] sm:$0xff]
    %v36 = vsub.f32 %v32, 1.0
    %v37 = vsub.f32 %v33, 1.0
    %vm38 = vcmp.ge.f32.partialorder %v36, 0.0
    %vm39 = vcmp.ge.f32.partialorder %v37, 0.0
    %v40 = vstv %s30
    %vm41 = vcmp.lt.f32.partialorder %v34, %v40
    %vm42 = vcmp.lt.f32.partialorder %v35, %v40
    %v43 = vsel %vm41, 1.0, 0.0
    %v44 = vsel %vm42, 1.0, 0.0
    %vm45 = vcmp.lt.f32.partialorder %v32, 0.0
    %vm46 = vcmp.lt.f32.partialorder %v33, 0.0
    %v47 = vstv %s31
    %vm48 = vcmp.gt.f32.partialorder %v34, %v47
    %vm49 = vcmp.gt.f32.partialorder %v35, %v47
    %vm50 = vmand %vm45, %vm48
    %vm51 = vmand %vm46, %vm49
    %v52 = vsel %vm50, -1.0, 0.0
    %v53 = vsel %vm51, -1.0, 0.0
    %v54 = vsel %vm38, %v43, %v52
    %v55 = vsel %vm39, %v44, %v53
    %v56 = vsub.f32 %v32, %v54
    %v57 = vsub.f32 %v33, %v55
    %58 = vst [vmem:[%s3] sm:$0xff] %v56
    %59 = vst [vmem:[%s3 + $0x8] sm:$0xff] %v57
    %v60 = vadd.f32 %v34, %v54
    %v61 = vadd.f32 %v35, %v55
    %62 = vst [vmem:[%s4] sm:$0xff] %v60
    %63 = vst [vmem:[%s4 + $0x8] sm:$0xff] %v61
    %64 = vst [vmem:[%s5] sm:$0xff] %v54
    %65 = vst [vmem:[%s5 + $0x8] sm:$0xff] %v55
    // Predicated region
    $region18: #{neuron_circuit.1} parent=1 // pred_check
      _
    $region19: #{neuron_circuit.1} parent=1 // pred_check_branch
      %67 = sbr.rel (0) target = $region21
    $region20: #{neuron_circuit.1} parent=1 // pred_region
      _
    $region21: #{neuron_circuit.1} parent=1 // pred_fallthru
      _
    // Predicated region
    $region22: #{neuron_circuit.1} parent=1 // pred_check
      _
    $region23: #{neuron_circuit.1} parent=1 // pred_check_branch
      %69 = sbr.rel (0) target = $region25
    $region24: #{neuron_circuit.1} parent=1 // pred_region
      _
    $region25: #{neuron_circuit.1} parent=1 // pred_fallthru
      _
    // Predicated region
    $region26: #{neuron_circuit.1} parent=1 // pred_check
      _
    $region27: #{neuron_circuit.1} parent=1 // pred_check_branch
      %71 = sbr.rel (0) target = $region29
    $region28: #{neuron_circuit.1} parent=1 // pred_region
      _
    $region29: #{neuron_circuit.1} parent=1 // pred_fallthru
      _
    // Predicated region
    $region30: #{neuron_circuit.1} parent=1 // pred_check
      _
    $region31: #{neuron_circuit.1} parent=1 // pred_check_branch
      %73 = sbr.rel (0) target = $region33
    $region32: #{neuron_circuit.1} parent=1 // pred_region
      _
    $region33: #{neuron_circuit.1} parent=1 // pred_fallthru
      _
    // Predicated region
    $region34: #{neuron_circuit.1} parent=1 // pred_check
      _
    $region35: #{neuron_circuit.1} parent=1 // pred_check_branch
      %75 = sbr.rel (0) target = $region37
    $region36: #{neuron_circuit.1} parent=1 // pred_region
      _
    $region37: #{neuron_circuit.1} parent=1 // pred_fallthru
      _
    // Predicated region
    $region38: #{neuron_circuit.1} parent=1 // pred_check
      _
    $region39: #{neuron_circuit.1} parent=1 // pred_check_branch
      %77 = sbr.rel (0) target = $region41
    $region40: #{neuron_circuit.1} parent=1 // pred_region
      _
    $region41: #{neuron_circuit.1} parent=1 // pred_fallthru
      _
    %78 = vsyncpa [#allocation3], 1

</llo_original>
